<compile_context>
chip_gen: v7x
topology: tpu7x:2x2x1
jax: 0.10.0
libtpu: 0.0.40
codegen_flags: <defaults>
</compile_context>

<pallas_src>
import functools
import math

import jax
import jax.numpy as jnp
from jax.experimental import pallas as pl
from jax.experimental.pallas import tpu as pltpu


def _round_up(x, m):
    return ((x + m - 1) // m) * m


# ---------------------------------------------------------------------------
# Kernels
# ---------------------------------------------------------------------------
def _kl_kernel(logits_ref, targets_ref, out_ref, *,
               fill, conf, ignore_index, apply_ignore,
               const_normal, const_ignore_tgt, sum_t_base,
               batch_tile, batch_size, mask_rows):
    """Partial KL(target_dist || softmax(logits)) summed over this batch tile.

    Per row (t only takes the compile-time values {conf, fill, 0}):
        sum_j t_j * (log t_j - logp_j) = const_row - sum_j t_j*x_j + (sum_j t_j)*lse
    computed with one fused weighted reduction (compare + select + mul + reduce)
    plus the exp pass for logsumexp.  The ignore_index column is removed with a
    static column slice.  The tile is reduced to one scalar in-kernel and written
    into a lane-dense (8, 128) output block.
    """
    x = logits_ref[...].astype(jnp.float32)                       # (tb, C)
    tgt = targets_ref[...]                                        # (tb, 1) int32

    # Per-row log-sum-exp (the only full-tile transcendental pass).
    m = jnp.max(x, axis=-1, keepdims=True)                        # (tb, 1)
    lse = jnp.log(jnp.sum(jnp.exp(x - m), axis=-1, keepdims=True)) + m

    # Fused weighted reduction: sum_j t'_j * x_j, t'_j = conf at target col else fill.
    cls = jax.lax.broadcasted_iota(jnp.int32, x.shape, 1)
    t_sel = jnp.where(cls == tgt, conf, fill)                     # (tb, C)
    sum_tx = jnp.sum(t_sel * x, axis=-1, keepdims=True)           # (tb, 1)

    if apply_ignore:
        x_ign = x[:, ignore_index:ignore_index + 1]               # static slice (tb, 1)
        is_ign = tgt == ignore_index
        t_ign = jnp.where(is_ign, conf, fill)                     # value t' placed at ign col
        sum_tx = sum_tx - t_ign * x_ign                           # zero the ignore column
        sum_t = sum_t_base - t_ign                                # sum_j t_j per row
        const = jnp.where(is_ign, const_ignore_tgt, const_normal)
        per_row = const - sum_tx + sum_t * lse
    else:
        per_row = const_normal - sum_tx + sum_t_base * lse

    if mask_rows:
        row = (pl.program_id(0) * batch_tile
               + jax.lax.broadcasted_iota(jnp.int32, per_row.shape, 0))
        per_row = jnp.where(row < batch_size, per_row, 0.0)       # drop ragged-tail garbage

    partial = jnp.sum(per_row)                                    # scalar per tile
    r = jax.lax.broadcasted_iota(jnp.int32, out_ref.shape, 0)
    c = jax.lax.broadcasted_iota(jnp.int32, out_ref.shape, 1)
    out_ref[...] = jnp.where((r == 0) & (c == 0), partial, 0.0)


def _nll_kernel(logits_ref, targets_ref, out_ref, *,
                ignore_index, batch_tile, batch_size, mask_rows):
    """Partial -sum log_softmax(logits)[i, target_i] and valid-count for this tile.

    Only the gathered logit is normalized (no full log-prob tile).  Writes
    num_partial at [0, 0] and den_partial at [0, 1] of a lane-dense (8, 128) block.
    """
    x = logits_ref[...].astype(jnp.float32)                       # (tb, C)
    tgt = targets_ref[...]                                        # (tb, 1) int32

    m = jnp.max(x, axis=-1, keepdims=True)
    lse = jnp.log(jnp.sum(jnp.exp(x - m), axis=-1, keepdims=True)) + m

    cls = jax.lax.broadcasted_iota(jnp.int32, x.shape, 1)
    x_tgt = jnp.sum(jnp.where(cls == tgt, x, 0.0), axis=-1, keepdims=True)
    picked = x_tgt - lse                                          # logp[i, target_i]

    valid = tgt != ignore_index
    if mask_rows:
        row = (pl.program_id(0) * batch_tile
               + jax.lax.broadcasted_iota(jnp.int32, tgt.shape, 0))
        valid = jnp.logical_and(valid, row < batch_size)

    num_p = jnp.sum(jnp.where(valid, -picked, 0.0))
    den_p = jnp.sum(valid.astype(jnp.float32))

    r = jax.lax.broadcasted_iota(jnp.int32, out_ref.shape, 0)
    c = jax.lax.broadcasted_iota(jnp.int32, out_ref.shape, 1)
    out_ref[...] = jnp.where((r == 0) & (c == 0), num_p,
                             jnp.where((r == 0) & (c == 1), den_p, 0.0))


# ---------------------------------------------------------------------------
# Tiling helpers
# ---------------------------------------------------------------------------
def _vmem_limit_bytes():
    try:
        cap = int(pltpu.get_tpu_info().vmem_capacity_bytes)       # 64 MiB v7x, 128 MiB v5e/v6e
    except Exception:
        cap = 64 * 1024 * 1024
    # Leave headroom for Mosaic internal scratch and temporaries.
    return int(min(cap * 3 // 4, 100 * 1024 * 1024))


def _choose_batch_tile(batch, n_classes, itemsize, vmem_limit):
    """Batch tile (multiple of 16) for the row-tiled grid.

    Steady-state VMEM per batch row ~= 2x double-buffered input block
    + ~5 full-width f32 temporaries (upcast x, exp, iota, select, product)
    + ~8 narrow (tb, 1) f32 row vectors, each lane-padded to 128 (-> 512 B/row).
    """
    per_row = n_classes * (2 * itemsize + 20) + 8 * 512
    tb_vmem = int(vmem_limit * 0.7) // per_row
    tb_dma = (4 * 1024 * 1024) // (n_classes * itemsize)          # ~4 MiB input blocks
    tb = max(16, (min(tb_vmem, tb_dma) // 16) * 16)
    # Keep enough grid steps for DMA/compute overlap and both v7x TensorCores.
    if batch >= 64:
        min_steps = 4
    elif batch >= 32:
        min_steps = 2
    else:
        min_steps = 1
    tb = min(tb, max(16, _round_up(pl.cdiv(batch, min_steps), 16)))
    return tb


# ---------------------------------------------------------------------------
# Module wrapper
# ---------------------------------------------------------------------------
class LabelSmoothingLossWithLogits:
    """Pallas TPU implementation of the PyTorch module's forward pass."""

    def __init__(self, n_classes, *, smoothing=0.0, ignore_index=-100):
        assert 0 <= smoothing <= 1
        self.n_classes = int(n_classes)
        self.smoothing = float(smoothing)
        self.confidence = 1.0 - float(smoothing)
        self.ignore_index = int(ignore_index)
        self.num_ignore_ixs = 1 + (0 <= self.ignore_index < self.n_classes)

    def __call__(self, input_logits, targets):
        B, C = input_logits.shape
        assert C == self.n_classes
        itemsize = jnp.dtype(input_logits.dtype).itemsize
        vmem_limit = _vmem_limit_bytes()
        tb = _choose_batch_tile(B, C, itemsize, vmem_limit)
        nb = pl.cdiv(B, tb)
        mask_rows = (B % tb) != 0          # ragged tail handled by mask, never by padding

        tgt2d = targets.astype(jnp.int32).reshape(B, 1)
        apply_ignore = 0 <= self.ignore_index < self.n_classes

        # TODO(synk): for LM-vocab-scale n_classes add a class-axis grid dimension
        # with an online logsumexp instead of holding a full row block in VMEM.
        in_specs = [
            pl.BlockSpec((tb, C), lambda i: (i, 0)),
            pl.BlockSpec((tb, 1), lambda i: (i, 0)),
        ]
        out_spec = pl.BlockSpec((8, 128), lambda i: (i, 0))
        out_shape = jax.ShapeDtypeStruct((nb * 8, 128), jnp.float32)
        compiler_params = pltpu.CompilerParams(
            dimension_semantics=("parallel",),
            vmem_limit_bytes=vmem_limit,
        )

        if self.smoothing > 0:
            fill = self.smoothing / (self.n_classes - self.num_ignore_ixs)
            conf = self.confidence
            log_fill = math.log(fill)
            conf_logconf = conf * math.log(conf) if conf > 0 else 0.0
            if apply_ignore:
                const_normal = (C - 2) * fill * log_fill + conf_logconf
                const_ignore_tgt = (C - 1) * fill * log_fill
            else:
                const_normal = (C - 1) * fill * log_fill + conf_logconf
                const_ignore_tgt = 0.0
            sum_t_base = fill * (C - 1) + conf      # sum_j t'_j before ignore correction

            kernel = functools.partial(
                _kl_kernel,
                fill=fill, conf=conf,
                ignore_index=self.ignore_index, apply_ignore=apply_ignore,
                const_normal=const_normal, const_ignore_tgt=const_ignore_tgt,
                sum_t_base=sum_t_base,
                batch_tile=tb, batch_size=B, mask_rows=mask_rows,
            )
            out = pl.pallas_call(
                kernel,
                out_shape=out_shape,
                grid_spec=pltpu.PrefetchScalarGridSpec(
                    num_scalar_prefetch=0, grid=(nb,),
                    in_specs=in_specs, out_specs=out_spec),
                compiler_params=compiler_params,
            )(input_logits, tgt2d)
            return jnp.sum(out) / float(B)
        else:
            kernel = functools.partial(
                _nll_kernel,
                ignore_index=self.ignore_index,
                batch_tile=tb, batch_size=B, mask_rows=mask_rows,
            )
            out = pl.pallas_call(
                kernel,
                out_shape=out_shape,
                grid_spec=pltpu.PrefetchScalarGridSpec(
                    num_scalar_prefetch=0, grid=(nb,),
                    in_specs=in_specs, out_specs=out_spec),
                compiler_params=compiler_params,
            )(input_logits, tgt2d)
            num = jnp.sum(out[:, 0])
            den = jnp.sum(out[:, 1])
            # Matches PyTorch: NaN/Inf if every target equals ignore_index.
            return num / den


# ---------------------------------------------------------------------------
# Pure-JAX reference (mirrors the PyTorch semantics) for a correctness check.
# ---------------------------------------------------------------------------
def _reference(logits, targets, n_classes, smoothing, ignore_index):
    logp = jax.nn.log_softmax(logits.astype(jnp.float32), axis=-1)
    B = targets.shape[0]
    if smoothing > 0:
        num_ignore = 1 + (0 <= ignore_index < n_classes)
        fill = smoothing / (n_classes - num_ignore)
        conf = 1.0 - smoothing
        t = jnp.full((B, n_classes), fill, dtype=jnp.float32)
        t = t.at[jnp.arange(B), targets].set(conf)
        if 0 <= ignore_index < n_classes:
            t = t.at[:, ignore_index].set(0.0)
        safe_t = jnp.where(t > 0, t, 1.0)
        pw = jnp.where(t > 0, t * (jnp.log(safe_t) - logp), 0.0)
        return jnp.sum(pw) / B
    else:
        picked = jnp.take_along_axis(logp, targets[:, None], axis=-1)[:, 0]
        valid = (targets != ignore_index).astype(jnp.float32)
        return -jnp.sum(picked * valid) / jnp.sum(valid)


if __name__ == "__main__":
    key = jax.random.PRNGKey(0)
    ok = True
    RT, AT = 3e-4, 3e-4

    # Case 1: smoothing > 0 (KLDivLoss batchmean) with an in-range ignore_index.
    B, C = 16, 128
    k1, k2 = jax.random.split(key)
    logits = jax.random.normal(k1, (B, C), dtype=jnp.float32)
    targets = jax.random.randint(k2, (B,), 0, C, dtype=jnp.int32)
    targets = targets.at[0].set(3)  # exercise target == ignore_index
    mod = LabelSmoothingLossWithLogits(C, smoothing=0.1, ignore_index=3)
    out1 = jax.block_until_ready(mod(logits, targets))
    ref1 = _reference(logits, targets, C, 0.1, 3)
    ok &= bool(jnp.allclose(out1, ref1, rtol=RT, atol=AT))

    # Case 2: smoothing == 0 (NLLLoss with ignore_index).
    mod0 = LabelSmoothingLossWithLogits(C, smoothing=0.0, ignore_index=3)
    out2 = jax.block_until_ready(mod0(logits, targets))
    ref2 = _reference(logits, targets, C, 0.0, 3)
    ok &= bool(jnp.allclose(out2, ref2, rtol=RT, atol=AT))

    # Case 3: ragged tiny batch (partial-block path), ignore_index outside [0, C).
    B3, C3 = 10, 96
    k3, k4 = jax.random.split(k1)
    logits3 = jax.random.normal(k3, (B3, C3), dtype=jnp.float32)
    targets3 = jax.random.randint(k4, (B3,), 0, C3, dtype=jnp.int32)
    mod3 = LabelSmoothingLossWithLogits(C3, smoothing=0.2, ignore_index=-100)
    out3 = jax.block_until_ready(mod3(logits3, targets3))
    ref3 = _reference(logits3, targets3, C3, 0.2, -100)
    ok &= bool(jnp.allclose(out3, ref3, rtol=RT, atol=AT))

    # Case 4: multi-block grid with a ragged tail (no padding), KL path.
    B4, C4 = 300, 128
    k5, k6 = jax.random.split(k2)
    logits4 = jax.random.normal(k5, (B4, C4), dtype=jnp.float32)
    targets4 = jax.random.randint(k6, (B4,), 0, C4, dtype=jnp.int32)
    targets4 = targets4.at[7].set(5)
    mod4 = LabelSmoothingLossWithLogits(C4, smoothing=0.1, ignore_index=5)
    out4 = jax.block_until_ready(mod4(logits4, targets4))
    ref4 = _reference(logits4, targets4, C4, 0.1, 5)
    ok &= bool(jnp.allclose(out4, ref4, rtol=RT, atol=AT))

    # Case 5: multi-block NLL path with some ignored targets and a ragged tail.
    targets5 = targets4.at[0].set(5).at[100].set(5)
    mod5 = LabelSmoothingLossWithLogits(C4, smoothing=0.0, ignore_index=5)
    out5 = jax.block_until_ready(mod5(logits4, targets5))
    ref5 = _reference(logits4, targets5, C4, 0.0, 5)
    ok &= bool(jnp.allclose(out5, ref5, rtol=RT, atol=AT))

    if ok:
        print("KERNEL_OK")
    else:
        print("MISMATCH", out1, ref1, out2, ref2, out3, ref3, out4, ref4, out5, ref5)
</pallas_src>

<mosaic_0001>
module attributes {stable_mosaic.version = 11 : i64} {
  func.func @_kl_kernel(%arg0: i32, %arg1: memref<16x128xf32, #tpu.memory_space<vmem>>, %arg2: memref<16x1xi32, #tpu.memory_space<vmem>>, %arg3: memref<8x128xf32, #tpu.memory_space<vmem>>) attributes {dimension_semantics = [#tpu.dimension_semantics<parallel>], iteration_bounds = array<i64: 1>, scalar_prefetch = 0 : i64, scratch_operands = 0 : i64, tpu.core_type = #tpu.core_type<tc>, window_params = [{transform_indices = @transform_0, window_bounds = array<i64: 16, 128>}, {transform_indices = @transform_1, window_bounds = array<i64: 16, 1>}, {transform_indices = @transform_2, window_bounds = array<i64: 8, 128>}]} {
    %c0 = arith.constant 0 : index
    %c0_0 = arith.constant 0 : index
    %0 = vector.load %arg1[%c0, %c0_0] : memref<16x128xf32, #tpu.memory_space<vmem>>, vector<16x128xf32>
    %c0_1 = arith.constant 0 : index
    %c0_2 = arith.constant 0 : index
    %1 = vector.load %arg2[%c0_1, %c0_2] : memref<16x1xi32, #tpu.memory_space<vmem>>, vector<16x1xi32>
    %cst = arith.constant dense<0xFF800000> : vector<16xf32>
    %2 = vector.multi_reduction <maximumf>, %0, %cst [1] : vector<16x128xf32> to vector<16xf32>
    %3 = vector.shape_cast %2 : vector<16xf32> to vector<16x1xf32>
    %4 = vector.broadcast %3 : vector<16x1xf32> to vector<16x128xf32>
    %5 = arith.subf %0, %4 : vector<16x128xf32>
    %6 = math.exp %5 : vector<16x128xf32>
    %cst_3 = arith.constant dense<0.000000e+00> : vector<16xf32>
    %7 = vector.multi_reduction <add>, %6, %cst_3 [1] : vector<16x128xf32> to vector<16xf32>
    %8 = vector.shape_cast %7 : vector<16xf32> to vector<16x1xf32>
    %9 = math.log %8 : vector<16x1xf32>
    %10 = arith.addf %9, %3 : vector<16x1xf32>
    %11 = tpu.iota {dimensions = array<i32: 1>} : vector<16x128xi32>
    %12 = vector.broadcast %1 : vector<16x1xi32> to vector<16x128xi32>
    %13 = arith.cmpi eq, %11, %12 : vector<16x128xi32>
    %cst_4 = arith.constant 0.899999976 : f32
    %cst_5 = arith.constant 7.93650805E-4 : f32
    %14 = vector.broadcast %cst_4 : f32 to vector<16x128xf32>
    %15 = vector.broadcast %cst_5 : f32 to vector<16x128xf32>
    %16 = arith.select %13, %14, %15 : vector<16x128xi1>, vector<16x128xf32>
    %17 = arith.mulf %16, %0 : vector<16x128xf32>
    %cst_6 = arith.constant dense<0.000000e+00> : vector<16xf32>
    %18 = vector.multi_reduction <add>, %17, %cst_6 [1] : vector<16x128xf32> to vector<16xf32>
    %19 = vector.shape_cast %18 : vector<16xf32> to vector<16x1xf32>
    %20 = vector.extract_strided_slice %0 {offsets = [0, 3], sizes = [16, 1], strides = [1, 1]} : vector<16x128xf32> to vector<16x1xf32>
    %c3_i32 = arith.constant 3 : i32
    %21 = vector.broadcast %c3_i32 : i32 to vector<16x1xi32>
    %22 = arith.cmpi eq, %1, %21 : vector<16x1xi32>
    %cst_7 = arith.constant 0.899999976 : f32
    %cst_8 = arith.constant 7.93650805E-4 : f32
    %23 = vector.broadcast %cst_7 : f32 to vector<16x1xf32>
    %24 = vector.broadcast %cst_8 : f32 to vector<16x1xf32>
    %25 = arith.select %22, %23, %24 : vector<16x1xi1>, vector<16x1xf32>
    %26 = arith.mulf %25, %20 : vector<16x1xf32>
    %27 = arith.subf %19, %26 : vector<16x1xf32>
    %cst_9 = arith.constant 1.0007937 : f32
    %28 = vector.broadcast %cst_9 : f32 to vector<16x1xf32>
    %29 = arith.subf %28, %25 : vector<16x1xf32>
    %cst_10 = arith.constant -0.719552457 : f32
    %cst_11 = arith.constant -0.808711171 : f32
    %30 = vector.broadcast %cst_10 : f32 to vector<16x1xf32>
    %31 = vector.broadcast %cst_11 : f32 to vector<16x1xf32>
    %32 = arith.select %22, %30, %31 : vector<16x1xi1>, vector<16x1xf32>
    %33 = arith.subf %32, %27 : vector<16x1xf32>
    %34 = arith.mulf %29, %10 : vector<16x1xf32>
    %35 = arith.addf %33, %34 : vector<16x1xf32>
    %36 = vector.shape_cast %35 : vector<16x1xf32> to vector<1x16x1xf32>
    %cst_12 = arith.constant dense<0.000000e+00> : vector<1xf32>
    %37 = vector.multi_reduction <add>, %36, %cst_12 [1, 2] : vector<1x16x1xf32> to vector<1xf32>
    %38 = vector.shape_cast %37 : vector<1xf32> to vector<1x1x1xf32>
    %39 = vector.extract %38[0, 0, 0] : f32 from vector<1x1x1xf32>
    %40 = tpu.iota {dimensions = array<i32: 0>} : vector<8x128xi32>
    %41 = tpu.iota {dimensions = array<i32: 1>} : vector<8x128xi32>
    %c0_i32 = arith.constant 0 : i32
    %42 = vector.broadcast %c0_i32 : i32 to vector<8x128xi32>
    %43 = arith.cmpi eq, %40, %42 : vector<8x128xi32>
    %c0_i32_13 = arith.constant 0 : i32
    %44 = vector.broadcast %c0_i32_13 : i32 to vector<8x128xi32>
    %45 = arith.cmpi eq, %41, %44 : vector<8x128xi32>
    %46 = arith.andi %43, %45 : vector<8x128xi1>
    %cst_14 = arith.constant 0.000000e+00 : f32
    %47 = vector.broadcast %39 : f32 to vector<8x128xf32>
    %48 = vector.broadcast %cst_14 : f32 to vector<8x128xf32>
    %49 = arith.select %46, %47, %48 : vector<8x128xi1>, vector<8x128xf32>
    %c0_15 = arith.constant 0 : index
    %c0_16 = arith.constant 0 : index
    %50 = vector.load %arg3[%c0_15, %c0_16] : memref<8x128xf32, #tpu.memory_space<vmem>>, vector<8x128xf32>
    tpu.vector_store %arg3[%c0_15, %c0_16], %49 {strides = array<i32>} : memref<8x128xf32, #tpu.memory_space<vmem>>, vector<8x128xf32>,
    return
  }
  func.func @transform_0(%arg0: i32) -> (i32, i32) {
    %c0_i32 = arith.constant 0 : i32
    %c0_i32_0 = arith.constant 0 : i32
    return %arg0, %c0_i32 : i32, i32
  }
  func.func @transform_1(%arg0: i32) -> (i32, i32) {
    %c0_i32 = arith.constant 0 : i32
    %c0_i32_0 = arith.constant 0 : i32
    return %arg0, %c0_i32 : i32, i32
  }
  func.func @transform_2(%arg0: i32) -> (i32, i32) {
    %c0_i32 = arith.constant 0 : i32
    %c0_i32_0 = arith.constant 0 : i32
    return %arg0, %c0_i32 : i32, i32
  }
}

</mosaic_0001>

<llo_original>
// kernel: tpu_custom_call.1
$region0: #{tpu_custom_call.1}
  #allocation0 [shape = 'u32[]', space=smem, size = 0x4, offset = 0x4, fixed_abs, tag = 'smem constant byte address 0x4 - core index']
  #allocation1 [shape = 'u32[144,128]{1,0:T(1,128)}', space=vmem, size = 0x12000, scoped, tag = 'internal scratch']
  %s0 = inlined_call_operand.vmem [shape: f32[16,128], index: 0, kind: input, shape index: {}]
  %s1 = inlined_call_operand.vmem [shape: s32[16,1], index: 1, kind: input, shape index: {}]
  %s2 = inlined_call_operand.hbm [shape: f32[8,128], index: 2, kind: output, shape index: {}]
  %s3 = sld [smem:[#allocation0]]
  $region18: #{tpu_custom_call.1} parent=0
    _
  %s5 = ssub.s32 1, %s3
  %s6 = scalar_select 0, %s5, %s3
  $region1: #{tpu_custom_call.1} parent=0
    #allocation2 [shape = 'u8[4096]{0}', space=vmem, size = 0x1000, scoped, tag = 'output window, operand 0, single buffered']
    #allocation3 [shape = 's32[1]{0}', space=sflag, size = 0x4, scoped, tag = 'scoped memory for tpu_custom_call.1']
    %7 = vsyncpa [#allocation3], 0
    // Predicated region
    $region2: #{tpu_custom_call.1} parent=1 // pred_check
      _
    $region3: #{tpu_custom_call.1} parent=1 // pred_check_branch
      %9 = sbr.rel (0) target = $region5
    $region4: #{tpu_custom_call.1} parent=1 // pred_region
      _
    $region5: #{tpu_custom_call.1} parent=1 // pred_fallthru
      _
    // Predicated region
    $region6: #{tpu_custom_call.1} parent=1 // pred_check
      _
    $region7: #{tpu_custom_call.1} parent=1 // pred_check_branch
      %11 = sbr.rel (0) target = $region9
    $region8: #{tpu_custom_call.1} parent=1 // pred_region
      _
    $region9: #{tpu_custom_call.1} parent=1 // pred_fallthru
      _
    %v12 = vld [vmem:[%s0] sm:$0xff]
    %v13 = vld [vmem:[%s0 + $0x8] sm:$0xff]
    %v14 = vld [vmem:[%s1] sm:$0xff]
    %v15 = vld [vmem:[%s1 + $0x8] sm:$0xff]
    %16 = vmax.xlane.f32.xlu0 %v12
    %v17 = vpop.xlane.xlu0 %16
    %18 = vmax.xlane.f32.xlu0 %v13
    %v19 = vpop.xlane.xlu0 %18
    %v20 = vsub.f32 %v12, %v17
    %v21 = vsub.f32 %v13, %v19
    %v22 = vmul.f32 %v20, 1.442695
    %v23 = vpow.pop %v22
    %v24 = vmul.f32 %v21, 1.442695
    %v25 = vpow.pop %v24
    %26 = vadd.xlane.f32.xlu0 %v23
    %v27 = vpop.xlane.xlu0 %26
    %28 = vadd.xlane.f32.xlu0 %v25
    %v29 = vpop.xlane.xlu0 %28
    %v30 = vlog2.pop %v27
    %v31 = vmul.f32 %v30, 0.6931472
    %v32 = vlog2.pop %v29
    %v33 = vmul.f32 %v32, 0.6931472
    %v34 = vadd.f32 %v31, %v17
    %v35 = vadd.f32 %v33, %v19
    %v36 = vlaneseq
    %v37 = vand.u32 %v36, 127
    %38 = vset.pattern.permute.xlu0 0
    %39 = vperm.xlu0 %38, %v14
    %v40 = vpop.permute.xlu0 %39
    %41 = vset.pattern.permute.xlu0 0
    %42 = vperm.xlu0 %41, %v15
    %v43 = vpop.permute.xlu0 %42
    %vm44 = vcmp.eq.s32.totalorder %v37, %v40
    %vm45 = vcmp.eq.s32.totalorder %v37, %v43
    %v46 = vsel %vm44, 0.9, 0.0007936508
    %v47 = vsel %vm45, 0.9, 0.0007936508
    %v48 = vmul.f32 %v46, %v12
    %v49 = vmul.f32 %v47, %v13
    %50 = vadd.xlane.f32.xlu0 %v48
    %v51 = vpop.xlane.xlu0 %50
    %52 = vadd.xlane.f32.xlu0 %v49
    %v53 = vpop.xlane.xlu0 %52
    %vm54 = vcmp.eq.s32.totalorder %v14, 3
    %vm55 = vcmp.eq.s32.totalorder %v15, 3
    %v56 = vsel %vm54, 0.9, 0.0007936508
    %v57 = vsel %vm55, 0.9, 0.0007936508
    %60 = vrot.lane.b32.xlu0 %v12, 125
    %v61 = vpop.permute.xlu0 %60
    %62 = vrot.lane.b32.xlu0 %v13, 125
    %v63 = vpop.permute.xlu0 %62
    %v66 = vmul.f32 %v56, %v61
    %v67 = vmul.f32 %v57, %v63
    %v68 = vsub.f32 %v51, %v66
    %v69 = vsub.f32 %v53, %v67
    %v70 = vsub.f32 1.0007937, %v56
    %v71 = vsub.f32 1.0007937, %v57
    %v72 = vsel %vm54, -0.71955246, -0.8087112
    %v73 = vsel %vm55, -0.71955246, -0.8087112
    %v74 = vsub.f32 %v72, %v68
    %v75 = vsub.f32 %v73, %v69
    %v76 = vmul.f32 %v70, %v34
    %v77 = vmul.f32 %v71, %v35
    %v78 = vadd.f32 %v74, %v76
    %v79 = vadd.f32 %v75, %v77
    %vm80 = vcmask 7168
    %v81 = vsel %vm80, %v78, 0.0
    %v82 = vsel %vm80, %v79, 0.0
    %v83 = vadd.f32 %v81, %v82
    %84 = vadd.xlane.f32.xlu0 %v83
    %v85 = vpop.xlane.xlu0 %84
    %v86 = vrot.slane %v85, 4
    %v87 = vadd.f32 %v85, %v86
    %v88 = vrot.slane %v87, 2
    %v89 = vadd.f32 %v87, %v88
    %v90 = vrot.slane %v89, 1
    %v91 = vadd.f32 %v89, %v90
    %s92 = vtos %v91
    %v93 = vlaneseq
    %v94 = vshrl.u32 %v93, 7
    %vm95 = vcmp.eq.s32.totalorder %v94, 0
    %vm96 = vcmp.eq.s32.totalorder %v37, 0
    %vm97 = vmand %vm95, %vm96
    %v98 = vstv %s92
    %v99 = vsel %vm97, %v98, 0.0
    %100 = vst [vmem:[#allocation2] sm:$0xff] %v99
    // Predicated region
    $region10: #{tpu_custom_call.1} parent=1 // pred_check
      _
    $region11: #{tpu_custom_call.1} parent=1 // pred_check_branch
      %102 = sbr.rel (0) target = $region13
    $region12: #{tpu_custom_call.1} parent=1 // pred_region
      %s104 = ssub.s32 128, 128
      %105 = vsyncadd [#allocation3], %s104
      %s107 = sshll.u32 [#allocation2], 4
      %s108 = int_to_ptr.vmem [resolvable:$true] %s107
      %110 = dma.vmem_to_hbm [thread:$0]  %s108, 128, %s2, [#allocation3]
    $region13: #{tpu_custom_call.1} parent=1 // pred_fallthru
      _
    // Predicated region
    $region14: #{tpu_custom_call.1} parent=1 // pred_check
      _
    $region15: #{tpu_custom_call.1} parent=1 // pred_check_branch
      %112 = sbr.rel (0) target = $region17
    $region16: #{tpu_custom_call.1} parent=1 // pred_region
      %113 = dma.done [#allocation3], 128
    $region17: #{tpu_custom_call.1} parent=1 // pred_fallthru
      _
    %114 = vsyncpa [#allocation3], 1

</llo_original>
